<compile_context>
chip_gen: v6e
topology: v6e:2x2x1
jax: 0.10.0
libtpu: 0.0.40
codegen_flags: <defaults>
</compile_context>

<pallas_src>
import jax
import jax.numpy as jnp
from jax.experimental import pallas as pl
from jax.experimental.pallas import tpu as pltpu
from jax.scipy.linalg import solve_triangular


def _make_mlp_kernel(n_layers, sem_layer_idx, out_dim, sem_dim):
    """Fused MLP kernel: all Linear + LeakyReLU / Tanh layers in one VMEM pass.

    Writes directly into sub-slices of a narrow [tile_n, out_dim + sem_dim] output block:
      columns [0:out_dim]                -> final (Tanh) layer output
      columns [out_dim:out_dim+sem_dim]  -> semantic_H layer output (if any)
    """

    def kernel(*refs):
        x_ref = refs[0]
        out_ref = refs[1 + 2 * n_layers]

        h = x_ref[...]  # bf16 (tile_n, D_in) — pre-cast in the wrapper
        h_sem = None
        for i in range(n_layers):
            w = refs[1 + 2 * i][...]   # bf16 for hidden layers, f32 for the final layer
            b = refs[2 + 2 * i][...]   # f32 (1, width)
            acc = jnp.dot(h, w, preferred_element_type=jnp.float32)  # MXU, f32 accumulate
            h = acc + b                                               # bias add in f32
            if i == n_layers - 1:
                h = jnp.tanh(h)                      # nn.Tanh on the last layer
            else:
                h = jnp.maximum(h, 0.01 * h)         # nn.LeakyReLU(negative_slope=0.01)
            if sem_layer_idx is not None and i == sem_layer_idx:
                h_sem = h                            # semantic_H = that layer's activation (f32)
            if i < n_layers - 1 and (i + 1) < n_layers - 1:
                # Feed the next hidden-layer matmul in bf16; the input to the FINAL
                # layer stays f32 (f32 x f32 matmul) for parity of the QR input.
                h = h.astype(jnp.bfloat16)

        # Direct sub-slice stores (no zeros, no concatenate); the HBM block is narrow,
        # so every written byte is payload.
        out_ref[:, :out_dim] = h.astype(out_ref.dtype)
        if sem_layer_idx is not None:
            out_ref[:, out_dim:out_dim + sem_dim] = h_sem.astype(out_ref.dtype)

    return kernel


def mlp_forward(x, weights, biases, sem_layer_idx, tile_n=1024):
    """Run the fused MLP. Returns (y_tilde [N, out_dim], semantic_H [N, sem_dim] or None)."""
    n_layers = len(weights)
    N, d_in = x.shape
    out_dim = weights[-1].shape[1]
    sem_dim = weights[sem_layer_idx].shape[1] if sem_layer_idx is not None else 0
    used = out_dim + sem_dim  # narrow output width (== full-array last dim -> legal block)

    # Batch tiling: quantize to 16 sublanes (bf16-friendly), pad N up to a tile multiple,
    # and cap the tile so the grid has >= 2 steps (lets "parallel" shard across v7x's 2 TCs).
    q = 16
    tile_n = max(q, (min(tile_n, N) // q) * q)
    if N >= 2 * q:
        tile_n = min(tile_n, max(q, (N // 2 // q) * q))
    n_pad = (-N) % tile_n
    n_padded = N + n_pad
    grid = (n_padded // tile_n,)

    # Pre-cast x to bf16 once in the wrapper (halves its HBM read bytes).
    x_p = x.astype(jnp.bfloat16)
    if n_pad:
        x_p = jnp.pad(x_p, ((0, n_pad), (0, 0)))

    in_specs = [pl.BlockSpec((tile_n, d_in), lambda i: (i, 0))]
    args = [x_p]
    for li, (w, b) in enumerate(zip(weights, biases)):
        # Hidden-layer weights pre-cast to bf16; final layer kept f32 (feeds QR).
        w_in = w if li == n_layers - 1 else w.astype(jnp.bfloat16)
        args += [w_in, b]
        # Full-array blocks, same block every grid step -> weights stay VMEM-resident.
        in_specs += [pl.BlockSpec(w.shape, lambda i: (0, 0)),
                     pl.BlockSpec(b.shape, lambda i: (0, 0))]

    out = pl.pallas_call(
        _make_mlp_kernel(n_layers, sem_layer_idx, out_dim, sem_dim),
        grid=grid,
        in_specs=in_specs,
        out_specs=pl.BlockSpec((tile_n, used), lambda i: (i, 0)),
        out_shape=jax.ShapeDtypeStruct((n_padded, used), jnp.float32),
        compiler_params=pltpu.CompilerParams(
            dimension_semantics=("parallel",),  # shard batch tiles across TCs on v7x
        ),
    )(*args)

    y_tilde = out[:N, :out_dim]
    semantic_H = out[:N, out_dim:used] if sem_layer_idx is not None else None
    return y_tilde, semantic_H


def orthonormalize(y):
    # TODO(synk): QR / triangular solve have no clean Pallas equivalent; computed in plain
    # JAX (XLA) between the Pallas MLP pass and the (fused) jnp.dot projections.
    m = y.shape[0]
    _, R = jnp.linalg.qr(y)
    eye = jnp.eye(R.shape[0], dtype=R.dtype)
    inv_r = solve_triangular(R, eye, lower=False)  # == inv(R), but stable/cheaper
    return jnp.sqrt(jnp.float32(m)) * inv_r


def spectralnet_forward(x, weights, biases, architecture,
                        semantic_out_dim=None, should_update_orth_weights=True,
                        orthonorm_weights=None, orthonorm_weights_2=None):
    # Which layer (if any) produces semantic_H (last match wins, as in the torch loop).
    sem_layer_idx = None
    if semantic_out_dim is not None:
        for i, d in enumerate(architecture):
            if d == semantic_out_dim:
                sem_layer_idx = i

    y_tilde, semantic_H = mlp_forward(x, weights, biases, sem_layer_idx)
    if sem_layer_idx is None:
        semantic_H = jnp.zeros_like(x)  # torch.zeros(x.shape)

    y2_tilde = semantic_H

    if should_update_orth_weights:
        orthonorm_weights = orthonormalize(y_tilde)
        if semantic_out_dim and sem_layer_idx is not None:
            orthonorm_weights_2 = orthonormalize(y2_tilde)
        else:
            # Guard: if semantic_out_dim is set but no layer matches, torch would invert a
            # singular R (inf/NaN); mirror the "else" branch instead of producing NaNs.
            orthonorm_weights_2 = semantic_H.T

    # Tiny projections: plain jnp.dot so XLA fuses them with the QR/solve epilogue
    # (a standalone pallas_call launch would cost more than the matmul itself).
    Y = jnp.dot(y_tilde, orthonorm_weights, preferred_element_type=jnp.float32)

    # `torch.all(semantic_H == 0)` is statically determined: semantic_H is a layer
    # activation (generically non-zero) iff sem_layer_idx matched, else exact zeros.
    if sem_layer_idx is not None:
        ortho_H = jnp.dot(y2_tilde, orthonorm_weights_2, preferred_element_type=jnp.float32)
    else:
        ortho_H = None

    return Y, semantic_H, ortho_H, orthonorm_weights, orthonorm_weights_2


def init_params(key, input_dim, architecture):
    """Deterministic nn.Linear-style init: U(-1/sqrt(fan_in), 1/sqrt(fan_in))."""
    weights, biases = [], []
    keys = jax.random.split(key, 2 * len(architecture))
    cur = input_dim
    for i, nxt in enumerate(architecture):
        k = 1.0 / (cur ** 0.5)
        w = jax.random.uniform(keys[2 * i], (cur, nxt), jnp.float32, -k, k)
        b = jax.random.uniform(keys[2 * i + 1], (1, nxt), jnp.float32, -k, k)
        weights.append(w)
        biases.append(b)
        if i != len(architecture) - 1:
            cur = nxt
    return weights, biases


if __name__ == "__main__":
    key = jax.random.PRNGKey(0)
    k_x, k_p = jax.random.split(key)

    N = 64                       # batch (rows); must be >= layer widths so QR's R is invertible
    input_dim = 16
    architecture = [32, 16, 8]   # two hidden (LeakyReLU) + final Tanh layer
    semantic_out_dim = 16        # matches architecture[1] -> semantic_H is that layer's output

    x = jax.random.normal(k_x, (N, input_dim), dtype=jnp.float32)
    weights, biases = init_params(k_p, input_dim, architecture)

    Y, semantic_H, ortho_H, ow, ow2 = spectralnet_forward(
        x, weights, biases, architecture,
        semantic_out_dim=semantic_out_dim,
        should_update_orth_weights=True,
    )

    jax.block_until_ready(Y)
    jax.block_until_ready(semantic_H)
    if ortho_H is not None:
        jax.block_until_ready(ortho_H)

    assert Y.shape == (N, architecture[-1])
    assert semantic_H.shape == (N, semantic_out_dim)
    assert ortho_H is not None and ortho_H.shape == (N, semantic_out_dim)
    assert bool(jnp.all(jnp.isfinite(Y)))
    assert bool(jnp.all(jnp.isfinite(ortho_H)))
    print("KERNEL_OK")
</pallas_src>

<mosaic_0001>
module attributes {stable_mosaic.version = 11 : i64} {
  func.func @kernel(%arg0: i32, %arg1: memref<32x16xbf16, #tpu.memory_space<vmem>>, %arg2: memref<16x32xbf16, #tpu.memory_space<vmem>>, %arg3: memref<1x32xf32, #tpu.memory_space<vmem>>, %arg4: memref<32x16xbf16, #tpu.memory_space<vmem>>, %arg5: memref<1x16xf32, #tpu.memory_space<vmem>>, %arg6: memref<16x8xf32, #tpu.memory_space<vmem>>, %arg7: memref<1x8xf32, #tpu.memory_space<vmem>>, %arg8: memref<32x24xf32, #tpu.memory_space<vmem>>) attributes {dimension_semantics = [#tpu.dimension_semantics<parallel>], iteration_bounds = array<i64: 2>, scalar_prefetch = 0 : i64, scratch_operands = 0 : i64, tpu.core_type = #tpu.core_type<tc>, window_params = [{transform_indices = @transform_0, window_bounds = array<i64: 32, 16>}, {pipeline_mode = #tpu.pipeline_mode<synchronous>, transform_indices = @transform_1, window_bounds = array<i64: 16, 32>}, {pipeline_mode = #tpu.pipeline_mode<synchronous>, transform_indices = @transform_2, window_bounds = array<i64: 1, 32>}, {pipeline_mode = #tpu.pipeline_mode<synchronous>, transform_indices = @transform_3, window_bounds = array<i64: 32, 16>}, {pipeline_mode = #tpu.pipeline_mode<synchronous>, transform_indices = @transform_4, window_bounds = array<i64: 1, 16>}, {pipeline_mode = #tpu.pipeline_mode<synchronous>, transform_indices = @transform_5, window_bounds = array<i64: 16, 8>}, {pipeline_mode = #tpu.pipeline_mode<synchronous>, transform_indices = @transform_6, window_bounds = array<i64: 1, 8>}, {transform_indices = @transform_7, window_bounds = array<i64: 32, 24>}]} {
    %c0 = arith.constant 0 : index
    %c0_0 = arith.constant 0 : index
    %0 = vector.load %arg1[%c0, %c0_0] : memref<32x16xbf16, #tpu.memory_space<vmem>>, vector<32x16xbf16>
    %c0_1 = arith.constant 0 : index
    %c0_2 = arith.constant 0 : index
    %1 = vector.load %arg2[%c0_1, %c0_2] : memref<16x32xbf16, #tpu.memory_space<vmem>>, vector<16x32xbf16>
    %c0_3 = arith.constant 0 : index
    %c0_4 = arith.constant 0 : index
    %2 = vector.load %arg3[%c0_3, %c0_4] : memref<1x32xf32, #tpu.memory_space<vmem>>, vector<1x32xf32>
    %cst = arith.constant dense<0.000000e+00> : vector<32x32xf32>
    %3 = tpu.matmul %0, %1, %cst {dimension_numbers = #tpu.dot_dimension_numbers<[1], [0], [0], [1], [0, 0, 1, 1], [], []>} : vector<32x16xbf16>, vector<16x32xbf16>, vector<32x32xf32> -> vector<32x32xf32>
    %4 = vector.broadcast %2 : vector<1x32xf32> to vector<32x32xf32>
    %5 = arith.addf %3, %4 : vector<32x32xf32>
    %cst_5 = arith.constant 0.00999999977 : f32
    %6 = vector.broadcast %cst_5 : f32 to vector<32x32xf32>
    %7 = arith.mulf %6, %5 : vector<32x32xf32>
    %8 = arith.maximumf %5, %7 : vector<32x32xf32>
    %9 = arith.truncf %8 : vector<32x32xf32> to vector<32x32xbf16>
    %c0_6 = arith.constant 0 : index
    %c0_7 = arith.constant 0 : index
    %10 = vector.load %arg4[%c0_6, %c0_7] : memref<32x16xbf16, #tpu.memory_space<vmem>>, vector<32x16xbf16>
    %c0_8 = arith.constant 0 : index
    %c0_9 = arith.constant 0 : index
    %11 = vector.load %arg5[%c0_8, %c0_9] : memref<1x16xf32, #tpu.memory_space<vmem>>, vector<1x16xf32>
    %cst_10 = arith.constant dense<0.000000e+00> : vector<32x16xf32>
    %12 = tpu.matmul %9, %10, %cst_10 {dimension_numbers = #tpu.dot_dimension_numbers<[1], [0], [0], [1], [0, 0, 1, 1], [], []>} : vector<32x32xbf16>, vector<32x16xbf16>, vector<32x16xf32> -> vector<32x16xf32>
    %13 = vector.broadcast %11 : vector<1x16xf32> to vector<32x16xf32>
    %14 = arith.addf %12, %13 : vector<32x16xf32>
    %cst_11 = arith.constant 0.00999999977 : f32
    %15 = vector.broadcast %cst_11 : f32 to vector<32x16xf32>
    %16 = arith.mulf %15, %14 : vector<32x16xf32>
    %17 = arith.maximumf %14, %16 : vector<32x16xf32>
    %c0_12 = arith.constant 0 : index
    %c0_13 = arith.constant 0 : index
    %18 = vector.load %arg6[%c0_12, %c0_13] : memref<16x8xf32, #tpu.memory_space<vmem>>, vector<16x8xf32>
    %c0_14 = arith.constant 0 : index
    %c0_15 = arith.constant 0 : index
    %19 = vector.load %arg7[%c0_14, %c0_15] : memref<1x8xf32, #tpu.memory_space<vmem>>, vector<1x8xf32>
    %cst_16 = arith.constant dense<0.000000e+00> : vector<32x8xf32>
    %20 = tpu.matmul %17, %18, %cst_16 {dimension_numbers = #tpu.dot_dimension_numbers<[1], [0], [0], [1], [0, 0, 1, 1], [], []>} : vector<32x16xf32>, vector<16x8xf32>, vector<32x8xf32> -> vector<32x8xf32>
    %21 = vector.broadcast %19 : vector<1x8xf32> to vector<32x8xf32>
    %22 = arith.addf %20, %21 : vector<32x8xf32>
    %23 = math.tanh %22 : vector<32x8xf32>
    %c0_17 = arith.constant 0 : index
    %c0_18 = arith.constant 0 : index
    %24 = vector.load %arg8[%c0_17, %c0_18] : memref<32x24xf32, #tpu.memory_space<vmem>>, vector<32x8xf32>
    tpu.vector_store %arg8[%c0_17, %c0_18], %23 {strides = array<i32>} : memref<32x24xf32, #tpu.memory_space<vmem>>, vector<32x8xf32>,
    %c0_19 = arith.constant 0 : index
    %c8 = arith.constant 8 : index
    %25 = vector.load %arg8[%c0_19, %c8] : memref<32x24xf32, #tpu.memory_space<vmem>>, vector<32x16xf32>
    tpu.vector_store %arg8[%c0_19, %c8], %17 {strides = array<i32>} : memref<32x24xf32, #tpu.memory_space<vmem>>, vector<32x16xf32>,
    return
  }
  func.func @transform_0(%arg0: i32) -> (i32, i32) {
    %c0_i32 = arith.constant 0 : i32
    %c0_i32_0 = arith.constant 0 : i32
    return %arg0, %c0_i32 : i32, i32
  }
  func.func @transform_1(%arg0: i32) -> (i32, i32) {
    %c0_i32 = arith.constant 0 : i32
    %c0_i32_0 = arith.constant 0 : i32
    %c0_i32_1 = arith.constant 0 : i32
    return %c0_i32, %c0_i32_0 : i32, i32
  }
  func.func @transform_2(%arg0: i32) -> (i32, i32) {
    %c0_i32 = arith.constant 0 : i32
    %c0_i32_0 = arith.constant 0 : i32
    %c0_i32_1 = arith.constant 0 : i32
    return %c0_i32, %c0_i32_0 : i32, i32
  }
  func.func @transform_3(%arg0: i32) -> (i32, i32) {
    %c0_i32 = arith.constant 0 : i32
    %c0_i32_0 = arith.constant 0 : i32
    %c0_i32_1 = arith.constant 0 : i32
    return %c0_i32, %c0_i32_0 : i32, i32
  }
  func.func @transform_4(%arg0: i32) -> (i32, i32) {
    %c0_i32 = arith.constant 0 : i32
    %c0_i32_0 = arith.constant 0 : i32
    %c0_i32_1 = arith.constant 0 : i32
    return %c0_i32, %c0_i32_0 : i32, i32
  }
  func.func @transform_5(%arg0: i32) -> (i32, i32) {
    %c0_i32 = arith.constant 0 : i32
    %c0_i32_0 = arith.constant 0 : i32
    %c0_i32_1 = arith.constant 0 : i32
    return %c0_i32, %c0_i32_0 : i32, i32
  }
  func.func @transform_6(%arg0: i32) -> (i32, i32) {
    %c0_i32 = arith.constant 0 : i32
    %c0_i32_0 = arith.constant 0 : i32
    %c0_i32_1 = arith.constant 0 : i32
    return %c0_i32, %c0_i32_0 : i32, i32
  }
  func.func @transform_7(%arg0: i32) -> (i32, i32) {
    %c0_i32 = arith.constant 0 : i32
    %c0_i32_0 = arith.constant 0 : i32
    return %arg0, %c0_i32 : i32, i32
  }
}

</mosaic_0001>

<llo_original>
// kernel: tpu_custom_call.1
$region0: #{tpu_custom_call.1}
  #allocation0 [shape = 'u32[]', space=smem, size = 0x4, offset = 0x4, fixed_abs, tag = 'smem constant byte address 0x4 - core index']
  #allocation1 [shape = 'u32[144,128]{1,0:T(1,128)}', space=vmem, size = 0x12000, scoped, tag = 'internal scratch']
  %s0 = inlined_call_operand.vmem [shape: bf16[64,16], index: 0, kind: input, shape index: {}]
  %s1 = inlined_call_operand.vmem [shape: bf16[16,32], index: 1, kind: input, shape index: {}]
  %s2 = inlined_call_operand.vmem [shape: f32[1,32], index: 2, kind: input, shape index: {}]
  %s3 = inlined_call_operand.vmem [shape: bf16[32,16], index: 3, kind: input, shape index: {}]
  %s4 = inlined_call_operand.vmem [shape: f32[1,16], index: 4, kind: input, shape index: {}]
  %s5 = inlined_call_operand.vmem [shape: f32[16,8], index: 5, kind: input, shape index: {}]
  %s6 = inlined_call_operand.vmem [shape: f32[1,8], index: 6, kind: input, shape index: {}]
  %s7 = inlined_call_operand.vmem [shape: f32[64,24], index: 7, kind: output, shape index: {}]
  %s8 = sld [smem:[#allocation0]]
  $region61: #{tpu_custom_call.1} parent=0
    _
  %s10 = ssub.s32 1, %s8
  %s11 = scalar_select 0, %s10, %s8
  loop: start=0, step=1, limit=4
  $region2: #{tpu_custom_call.1} parent=0 // loop_pre_header
    _
  $region3: #{tpu_custom_call.1} parent=0 // loop_header
    %s13 = sphi 0, %s17
    %p14 = scmp.ge.s32.totalorder %s13, 4
    %s23 = sphi 0, %s25
    %s26 = sphi 0, %s23
    %s27 = sphi 0, %s26
    %s43 = sphi 0, %s27
    %s47 = sphi 0, %s47
    %s49 = sphi 0, %s47
    %s50 = sphi 0, %s49
    %s64 = sphi 0, %s50
    %s68 = sphi 0, %s68
    %s70 = sphi 0, %s68
    %s71 = sphi 0, %s70
    %s85 = sphi 0, %s71
    %s89 = sphi 0, %s89
    %s91 = sphi 0, %s89
    %s92 = sphi 0, %s91
    %s106 = sphi 0, %s92
    %s110 = sphi 0, %s110
    %s112 = sphi 0, %s110
    %s113 = sphi 0, %s112
    %s127 = sphi 0, %s113
    %s131 = sphi 0, %s131
    %s133 = sphi 0, %s131
    %s134 = sphi 0, %s133
    %s148 = sphi 0, %s134
    %s152 = sphi 0, %s152
    %s154 = sphi 0, %s152
    %s155 = sphi 0, %s154
    %s169 = sphi 0, %s155
    %s175 = sphi 0, %s177
    %s178 = sphi 0, %s175
    %s179 = sphi 0, %s178
    %s195 = sphi 0, %s179
  $region4: #{tpu_custom_call.1} parent=0 // loop_header_branch
    %16 = sbr.rel (%p14) target = $region8
  $region5: #{tpu_custom_call.1} parent=0 // loop_body
    %s18 = ssub.s32 %s13, 1
    %s19 = ssub.s32 %s13, 2
    %s20 = sadd.s32 %s13, 1
    %s21 = ssub.s32 %s13, %s20
    %p22 = scmp.eq.s32.totalorder %s21, 0
    %s24 = sadd.s32 %s23, 1
    %s25 = scalar_select %p22, %s23, %s24
    %p28 = pneg %p22
    %p29 = scmp.eq.s32.totalorder %s13, 1
    %p30 = por %p28, %p29
    %p31 = scmp.ne.s32.totalorder %s23, %s26
    %p32 = scmp.eq.s32.totalorder %s13, 0
    %p33 = por %p31, %p32
    %p34 = scmp.ne.s32.totalorder %s23, %s26
    %p35 = scmp.eq.s32.totalorder %s18, 1
    %p36 = por %p34, %p35
    %p37 = scmp.ne.s32.totalorder %s26, %s27
    %p38 = scmp.eq.s32.totalorder %s18, 0
    %p39 = por %p37, %p38
    %p40 = scmp.ne.s32.totalorder %s26, %s27
    %p41 = scmp.eq.s32.totalorder %s19, 1
    %p42 = por %p40, %p41
    %p44 = scmp.ne.s32.totalorder %s27, %s43
    %p45 = scmp.eq.s32.totalorder %s19, 0
    %p46 = por %p44, %p45
    %s48 = sadd.s32 %s47, 1
    %p51 = scmp.eq.s32.totalorder %s13, 1
    %p52 = scmp.ne.s32.totalorder %s47, %s49
    %p53 = scmp.eq.s32.totalorder %s13, 0
    %p54 = por %p52, %p53
    %p55 = scmp.ne.s32.totalorder %s47, %s49
    %p56 = scmp.eq.s32.totalorder %s18, 1
    %p57 = por %p55, %p56
    %p58 = scmp.ne.s32.totalorder %s49, %s50
    %p59 = scmp.eq.s32.totalorder %s18, 0
    %p60 = por %p58, %p59
    %p61 = scmp.ne.s32.totalorder %s49, %s50
    %p62 = scmp.eq.s32.totalorder %s19, 1
    %p63 = por %p61, %p62
    %p65 = scmp.ne.s32.totalorder %s50, %s64
    %p66 = scmp.eq.s32.totalorder %s19, 0
    %p67 = por %p65, %p66
    %s69 = sadd.s32 %s68, 1
    %p72 = scmp.eq.s32.totalorder %s13, 1
    %p73 = scmp.ne.s32.totalorder %s68, %s70
    %p74 = scmp.eq.s32.totalorder %s13, 0
    %p75 = por %p73, %p74
    %p76 = scmp.ne.s32.totalorder %s68, %s70
    %p77 = scmp.eq.s32.totalorder %s18, 1
    %p78 = por %p76, %p77
    %p79 = scmp.ne.s32.totalorder %s70, %s71
    %p80 = scmp.eq.s32.totalorder %s18, 0
    %p81 = por %p79, %p80
    %p82 = scmp.ne.s32.totalorder %s70, %s71
    %p83 = scmp.eq.s32.totalorder %s19, 1
    %p84 = por %p82, %p83
    %p86 = scmp.ne.s32.totalorder %s71, %s85
    %p87 = scmp.eq.s32.totalorder %s19, 0
    %p88 = por %p86, %p87
    %s90 = sadd.s32 %s89, 1
    %p93 = scmp.eq.s32.totalorder %s13, 1
    %p94 = scmp.ne.s32.totalorder %s89, %s91
    %p95 = scmp.eq.s32.totalorder %s13, 0
    %p96 = por %p94, %p95
    %p97 = scmp.ne.s32.totalorder %s89, %s91
    %p98 = scmp.eq.s32.totalorder %s18, 1
    %p99 = por %p97, %p98
    %p100 = scmp.ne.s32.totalorder %s91, %s92
    %p101 = scmp.eq.s32.totalorder %s18, 0
    %p102 = por %p100, %p101
    %p103 = scmp.ne.s32.totalorder %s91, %s92
    %p104 = scmp.eq.s32.totalorder %s19, 1
    %p105 = por %p103, %p104
    %p107 = scmp.ne.s32.totalorder %s92, %s106
    %p108 = scmp.eq.s32.totalorder %s19, 0
    %p109 = por %p107, %p108
    %s111 = sadd.s32 %s110, 1
    %p114 = scmp.eq.s32.totalorder %s13, 1
    %p115 = scmp.ne.s32.totalorder %s110, %s112
    %p116 = scmp.eq.s32.totalorder %s13, 0
    %p117 = por %p115, %p116
    %p118 = scmp.ne.s32.totalorder %s110, %s112
    %p119 = scmp.eq.s32.totalorder %s18, 1
    %p120 = por %p118, %p119
    %p121 = scmp.ne.s32.totalorder %s112, %s113
    %p122 = scmp.eq.s32.totalorder %s18, 0
    %p123 = por %p121, %p122
    %p124 = scmp.ne.s32.totalorder %s112, %s113
    %p125 = scmp.eq.s32.totalorder %s19, 1
    %p126 = por %p124, %p125
    %p128 = scmp.ne.s32.totalorder %s113, %s127
    %p129 = scmp.eq.s32.totalorder %s19, 0
    %p130 = por %p128, %p129
    %s132 = sadd.s32 %s131, 1
    %p135 = scmp.eq.s32.totalorder %s13, 1
    %p136 = scmp.ne.s32.totalorder %s131, %s133
    %p137 = scmp.eq.s32.totalorder %s13, 0
    %p138 = por %p136, %p137
    %p139 = scmp.ne.s32.totalorder %s131, %s133
    %p140 = scmp.eq.s32.totalorder %s18, 1
    %p141 = por %p139, %p140
    %p142 = scmp.ne.s32.totalorder %s133, %s134
    %p143 = scmp.eq.s32.totalorder %s18, 0
    %p144 = por %p142, %p143
    %p145 = scmp.ne.s32.totalorder %s133, %s134
    %p146 = scmp.eq.s32.totalorder %s19, 1
    %p147 = por %p145, %p146
    %p149 = scmp.ne.s32.totalorder %s134, %s148
    %p150 = scmp.eq.s32.totalorder %s19, 0
    %p151 = por %p149, %p150
    %s153 = sadd.s32 %s152, 1
    %p156 = scmp.eq.s32.totalorder %s13, 1
    %p157 = scmp.ne.s32.totalorder %s152, %s154
    %p158 = scmp.eq.s32.totalorder %s13, 0
    %p159 = por %p157, %p158
    %p160 = scmp.ne.s32.totalorder %s152, %s154
    %p161 = scmp.eq.s32.totalorder %s18, 1
    %p162 = por %p160, %p161
    %p163 = scmp.ne.s32.totalorder %s154, %s155
    %p164 = scmp.eq.s32.totalorder %s18, 0
    %p165 = por %p163, %p164
    %p166 = scmp.ne.s32.totalorder %s154, %s155
    %p167 = scmp.eq.s32.totalorder %s19, 1
    %p168 = por %p166, %p167
    %p170 = scmp.ne.s32.totalorder %s155, %s169
    %p171 = scmp.eq.s32.totalorder %s19, 0
    %p172 = por %p170, %p171
    %s173 = ssub.s32 %s13, %s20
    %p174 = scmp.eq.s32.totalorder %s173, 0
    %s176 = sadd.s32 %s175, 1
    %s177 = scalar_select %p174, %s175, %s176
    %p180 = pneg %p174
    %p181 = scmp.eq.s32.totalorder %s13, 1
    %p182 = por %p180, %p181
    %p183 = scmp.ne.s32.totalorder %s175, %s178
    %p184 = scmp.eq.s32.totalorder %s13, 0
    %p185 = por %p183, %p184
    %p186 = scmp.ne.s32.totalorder %s175, %s178
    %p187 = scmp.eq.s32.totalorder %s18, 1
    %p188 = por %p186, %p187
    %p189 = scmp.ne.s32.totalorder %s178, %s179
    %p190 = scmp.eq.s32.totalorder %s18, 0
    %p191 = por %p189, %p190
    %p192 = scmp.ne.s32.totalorder %s178, %s179
    %p193 = scmp.eq.s32.totalorder %s19, 1
    %p194 = por %p192, %p193
    %p196 = scmp.ne.s32.totalorder %s179, %s195
    %p197 = scmp.eq.s32.totalorder %s19, 0
    %p198 = por %p196, %p197
    %p199 = scmp.le.s32.totalorder 1, %s13
    %p200 = scmp.lt.s32.totalorder %s13, 3
    %p201 = pnand %p199, %p200
    %p202 = pneg %p201
    // Predicated region
    $region9: #{tpu_custom_call.1} parent=5 // pred_check
      _
    $region10: #{tpu_custom_call.1} parent=5 // pred_check_branch
      %204 = sbr.rel (%p201) target = $region12
    $region11: #{tpu_custom_call.1} parent=5 // pred_region
      %s205 = ssub.s32 %s13, 1
      // Predicated region
      $region13: #{tpu_custom_call.1} parent=11 // pred_check
        %p206 = pneg %p60
      $region14: #{tpu_custom_call.1} parent=11 // pred_check_branch
        %208 = sbr.rel (%p206) target = $region16
      $region15: #{tpu_custom_call.1} parent=11 // pred_region
        _
      $region16: #{tpu_custom_call.1} parent=11 // pred_fallthru
        _
      // Predicated region
      $region17: #{tpu_custom_call.1} parent=11 // pred_check
        %p209 = pneg %p81
      $region18: #{tpu_custom_call.1} parent=11 // pred_check_branch
        %211 = sbr.rel (%p209) target = $region20
      $region19: #{tpu_custom_call.1} parent=11 // pred_region
        _
      $region20: #{tpu_custom_call.1} parent=11 // pred_fallthru
        _
      // Predicated region
      $region21: #{tpu_custom_call.1} parent=11 // pred_check
        %p212 = pneg %p102
      $region22: #{tpu_custom_call.1} parent=11 // pred_check_branch
        %214 = sbr.rel (%p212) target = $region24
      $region23: #{tpu_custom_call.1} parent=11 // pred_region
        _
      $region24: #{tpu_custom_call.1} parent=11 // pred_fallthru
        _
      // Predicated region
      $region25: #{tpu_custom_call.1} parent=11 // pred_check
        %p215 = pneg %p123
      $region26: #{tpu_custom_call.1} parent=11 // pred_check_branch
        %217 = sbr.rel (%p215) target = $region28
      $region27: #{tpu_custom_call.1} parent=11 // pred_region
        _
      $region28: #{tpu_custom_call.1} parent=11 // pred_fallthru
        _
      // Predicated region
      $region29: #{tpu_custom_call.1} parent=11 // pred_check
        %p218 = pneg %p144
      $region30: #{tpu_custom_call.1} parent=11 // pred_check_branch
        %220 = sbr.rel (%p218) target = $region32
      $region31: #{tpu_custom_call.1} parent=11 // pred_region
        _
      $region32: #{tpu_custom_call.1} parent=11 // pred_fallthru
        _
      // Predicated region
      $region33: #{tpu_custom_call.1} parent=11 // pred_check
        %p221 = pneg %p165
      $region34: #{tpu_custom_call.1} parent=11 // pred_check_branch
        %223 = sbr.rel (%p221) target = $region36
      $region35: #{tpu_custom_call.1} parent=11 // pred_region
        _
      $region36: #{tpu_custom_call.1} parent=11 // pred_fallthru
        _
    $region12: #{tpu_custom_call.1} parent=5 // pred_fallthru
      _
    %p224 = scmp.lt.s32.totalorder %s13, 2
    // Predicated region
    $region37: #{tpu_custom_call.1} parent=5 // pred_check
      %p225 = pneg %p224
    $region38: #{tpu_custom_call.1} parent=5 // pred_check_branch
      %227 = sbr.rel (%p225) target = $region40
    $region39: #{tpu_custom_call.1} parent=5 // pred_region
      // Predicated region
      $region41: #{tpu_custom_call.1} parent=39 // pred_check
        %p228 = pneg %p33
      $region42: #{tpu_custom_call.1} parent=39 // pred_check_branch
        %230 = sbr.rel (%p228) target = $region44
      $region43: #{tpu_custom_call.1} parent=39 // pred_region
        %s231 = smul.u32 4, %s13
        %p232 = scmp.lt.s32.totalorder %s231, 7
        %s233 = scalar_select %p232, %s231, 7
        %s234 = smul.addr %s233, 4
        %s235 = scalar_lea.vmem %s0, %s234
        %s236 = smul.u32 4, %s13
      $region44: #{tpu_custom_call.1} parent=39 // pred_fallthru
        _
    $region40: #{tpu_custom_call.1} parent=5 // pred_fallthru
      _
    %p237 = scmp.le.s32.totalorder 1, %s13
    %p238 = scmp.lt.s32.totalorder %s13, 3
    %p239 = pnand %p237, %p238
    %p240 = pneg %p239
    // Predicated region
    $region45: #{tpu_custom_call.1} parent=5 // pred_check
      _
    $region46: #{tpu_custom_call.1} parent=5 // pred_check_branch
      %242 = sbr.rel (%p239) target = $region48
    $region47: #{tpu_custom_call.1} parent=5 // pred_region
      %s243 = ssub.s32 %s13, 1
      %s244 = smul.u32 4, %s18
      %p245 = scmp.lt.s32.totalorder %s244, 7
      %s246 = scalar_select %p245, %s244, 7
      %s247 = smul.addr %s246, 4
      %s248 = scalar_lea.vmem %s0, %s247
      %p249 = pneg %p39
      %p250 = pneg %p36
      %p251 = pneg %p60
      %p252 = pneg %p57
      %p253 = pneg %p81
      %p254 = pneg %p78
      %p255 = pneg %p102
      %p256 = pneg %p99
      %p257 = pneg %p123
      %p258 = pneg %p120
      %p259 = pneg %p144
      %p260 = pneg %p141
      %p261 = pneg %p165
      %p262 = pneg %p162
      %p263 = pneg %p191
      %p264 = pneg %p188
      %s265 = smul.u32 4, %s18
      %p266 = scmp.lt.s32.totalorder %s265, 7
      %s267 = scalar_select %p266, %s265, 7
      %s268 = smul.addr %s267, 8
      %s269 = scalar_lea.vmem %s7, %s268
      %s270 = smul.u32 4, %s18
      %p271 = scmp.lt.s32.totalorder %s270, 7
      %s272 = scalar_select %p271, %s270, 7
      %s273 = smul.addr %s272, 4
      %s274 = scalar_lea.vmem %s0, %s273
      %s275 = smul.u32 4, %s18
      %s276 = smul.u32 4, %s18
      %p277 = scmp.lt.s32.totalorder %s276, 7
      %s278 = scalar_select %p277, %s276, 7
      %s279 = smul.addr %s278, 8
      %s280 = scalar_lea.vmem %s7, %s279
      %s281 = smul.u32 4, %s18
      %v283 = vld [vmem:[%s274] sm:$0xf]
      %v284 = vld [vmem:[%s274 + $0x4] sm:$0xf]
      %v285 = vld [vmem:[%s274 + $0x8] sm:$0xf]
      %v286 = vld [vmem:[%s274 + $0xc] sm:$0xf]
      %v287 = vld [vmem:[%s1] sm:$0xf]
      %v288 = vld [vmem:[%s1 + $0x4] sm:$0xf]
      %v289 = vld [vmem:[%s2] sm:$0x1]
      %v291 = vlaneseq
      %v292 = vshrl.u32 %v291, 7
      %v293 = vsub.s32 0, %v292
      %v294 = vrot.slane %v289, %v293
      %v300 = vunpack.c.l.b16 %v283
      %v301 = vunpack.c.l.b16 %v284
      %v302 = vunpack.c.l.b16 %v285
      %v303 = vunpack.c.l.b16 %v286
      %v304 = vpack.c.b16 %v301, %v300
      %v305 = vpack.c.b16 %v303, %v302
      %v308 = vunpack.c.l.b16 %v287
      %v309 = vunpack.c.l.b16 %v288
      %v310 = vpack.c.b16 %v309, %v308
      %vm312 = vcmask 130048
      %v314 = vsel %vm312, %v304, 0
      %v317 = vsel %vm312, %v305, 0
      %319 = vmatprep.subr.bf16.mxu0 0
      %320 = vmatpush1.bf16.msra.mxu0 0
      %321 = vmatprep.subr.bf16.mxu0 0
      %322 = vmatpush1.bf16.msra.mxu0 0
      %323 = vmatprep.subr.bf16.mxu0 0
      %324 = vmatpush1.bf16.msra.mxu0 0
      %325 = vmatprep.subr.bf16.mxu0 0
      %326 = vmatpush1.bf16.msra.mxu0 0
      %327 = vmatprep.subr.bf16.mxu0 0
      %328 = vmatpush1.bf16.msra.mxu0 0
      %329 = vmatprep.subr.bf16.mxu0 0
      %330 = vmatpush1.bf16.msra.mxu0 0
      %331 = vmatprep.subr.bf16.mxu0 0
      %332 = vmatpush1.bf16.msra.mxu0 0
      %333 = vmatprep.subr.bf16.mxu0 0
      %334 = vmatpush1.bf16.msra.mxu0 %v310
      %335 = vmatprep.subr.bf16.mxu0 0
      %336 = vmatpush2.bf16.msra.mxu0 0
      %337 = vmatprep.subr.bf16.mxu0 0
      %338 = vmatpush2.bf16.msra.mxu0 0
      %339 = vmatprep.subr.bf16.mxu0 0
      %340 = vmatpush2.bf16.msra.mxu0 0
      %341 = vmatprep.subr.bf16.mxu0 0
      %342 = vmatpush2.bf16.msra.mxu0 0
      %343 = vmatprep.subr.bf16.mxu0 0
      %344 = vmatpush2.bf16.msra.mxu0 0
      %345 = vmatprep.subr.bf16.mxu0 0
      %346 = vmatpush2.bf16.msra.mxu0 0
      %347 = vmatprep.subr.bf16.mxu0 0
      %348 = vmatpush2.bf16.msra.mxu0 0
      %349 = vmatprep.subr.bf16.mxu0 0
      %350 = vmatpush2.bf16.msra.mxu0 0
      %351 = vmatprep.mubr.bf16.mxu0 0
      %352 = vmatmul.mubr.bf16.gmra.mxu0 %v314
      %v353 = vpop.f32.mrf.mxu0
      %v354 = vadd.f32 %v294, %v353
      %v355 = vpop.f32.mrf.mxu0
      %v356 = vpop.f32.mrf.mxu0
      %v357 = vadd.f32 %v294, %v356
      %v358 = vpop.f32.mrf.mxu0
      %359 = vmatprep.mubr.bf16.mxu0 0
      %360 = vmatmul.mubr.bf16.gmra.mxu0 %v317
      %v361 = vpop.f32.mrf.mxu0
      %v362 = vadd.f32 %v294, %v361
      %v363 = vpop.f32.mrf.mxu0
      %v364 = vpop.f32.mrf.mxu0
      %v365 = vadd.f32 %v294, %v364
      %v366 = vpop.f32.mrf.mxu0
      %367 = vdwg.mxu0
      %v368 = vmul.f32 %v354, 0.01
      %v369 = vmul.f32 %v357, 0.01
      %v370 = vmul.f32 %v362, 0.01
      %v371 = vmul.f32 %v365, 0.01
      %v372 = vmax.f32 %v354, %v368
      %v373 = vmax.f32 %v357, %v369
      %v374 = vmax.f32 %v362, %v370
      %v375 = vmax.f32 %v365, %v371
      %v376 = vpack.c.bf16 %v373, %v372
      %v377 = vpack.c.bf16 %v375, %v374
      %v378 = vld [vmem:[%s3] sm:$0xf]
      %v379 = vld [vmem:[%s3 + $0x4] sm:$0xf]
      %v380 = vld [vmem:[%s3 + $0x8] sm:$0xf]
      %v381 = vld [vmem:[%s3 + $0xc] sm:$0xf]
      %v382 = vld [vmem:[%s4] sm:$0x1]
      %v384 = vlaneseq
      %v385 = vshrl.u32 %v384, 7
      %v386 = vsub.s32 0, %v385
      %v387 = vrot.slane %v382, %v386
      %v393 = vunpack.c.l.b16 %v378
      %v394 = vunpack.c.l.b16 %v379
      %v395 = vunpack.c.l.b16 %v380
      %v396 = vunpack.c.l.b16 %v381
      %v397 = vpack.c.b16 %v394, %v393
      %v398 = vpack.c.b16 %v396, %v395
      %vm401 = vcmask 261120
      %v403 = vsel %vm401, %v376, 0
      %v406 = vsel %vm401, %v377, 0
      %408 = vmatprep.subr.bf16.mxu0 0
      %409 = vmatpush1.bf16.msra.mxu0 0
      %410 = vmatprep.subr.bf16.mxu0 0
      %411 = vmatpush1.bf16.msra.mxu0 0
      %412 = vmatprep.subr.bf16.mxu0 0
      %413 = vmatpush1.bf16.msra.mxu0 0
      %414 = vmatprep.subr.bf16.mxu0 0
      %415 = vmatpush1.bf16.msra.mxu0 0
      %416 = vmatprep.subr.bf16.mxu0 0
      %417 = vmatpush1.bf16.msra.mxu0 0
      %418 = vmatprep.subr.bf16.mxu0 0
      %419 = vmatpush1.bf16.msra.mxu0 0
      %420 = vmatprep.subr.bf16.mxu0 0
      %421 = vmatpush1.bf16.msra.mxu0 %v398
      %422 = vmatprep.subr.bf16.mxu0 0
      %423 = vmatpush1.bf16.msra.mxu0 %v397
      %424 = vmatprep.subr.bf16.mxu0 0
      %425 = vmatpush2.bf16.msra.mxu0 0
      %426 = vmatprep.subr.bf16.mxu0 0
      %427 = vmatpush2.bf16.msra.mxu0 0
      %428 = vmatprep.subr.bf16.mxu0 0
      %429 = vmatpush2.bf16.msra.mxu0 0
      %430 = vmatprep.subr.bf16.mxu0 0
      %431 = vmatpush2.bf16.msra.mxu0 0
      %432 = vmatprep.subr.bf16.mxu0 0
      %433 = vmatpush2.bf16.msra.mxu0 0
      %434 = vmatprep.subr.bf16.mxu0 0
      %435 = vmatpush2.bf16.msra.mxu0 0
      %436 = vmatprep.subr.bf16.mxu0 0
      %437 = vmatpush2.bf16.msra.mxu0 0
      %438 = vmatprep.subr.bf16.mxu0 0
      %439 = vmatpush2.bf16.msra.mxu0 0
      %440 = vmatprep.mubr.bf16.mxu0 0
      %441 = vmatmul.mubr.bf16.gmra.mxu0 %v403
      %v442 = vpop.f32.mrf.mxu0
      %v443 = vadd.f32 %v387, %v442
      %v444 = vpop.f32.mrf.mxu0
      %v445 = vpop.f32.mrf.mxu0
      %v446 = vadd.f32 %v387, %v445
      %v447 = vpop.f32.mrf.mxu0
      %448 = vmatprep.mubr.bf16.mxu0 0
      %449 = vmatmul.mubr.bf16.gmra.mxu0 %v406
      %v450 = vpop.f32.mrf.mxu0
      %v451 = vadd.f32 %v387, %v450
      %v452 = vpop.f32.mrf.mxu0
      %v453 = vpop.f32.mrf.mxu0
      %v454 = vadd.f32 %v387, %v453
      %v455 = vpop.f32.mrf.mxu0
      %456 = vdwg.mxu0
      %v457 = vmul.f32 %v443, 0.01
      %v458 = vmul.f32 %v446, 0.01
      %v459 = vmul.f32 %v451, 0.01
      %v460 = vmul.f32 %v454, 0.01
      %v461 = vmax.f32 %v443, %v457
      %v462 = vmax.f32 %v446, %v458
      %v463 = vmax.f32 %v451, %v459
      %v464 = vmax.f32 %v454, %v460
      %v465 = vld [vmem:[%s5] sm:$0xff]
      %v466 = vld [vmem:[%s5 + $0x8] sm:$0xff]
      %v467 = vld [vmem:[%s6] sm:$0x1]
      %v469 = vlaneseq
      %v470 = vshrl.u32 %v469, 7
      %v471 = vsub.s32 0, %v470
      %v472 = vrot.slane %v467, %v471
      %v475 = vsel %vm312, %v461, 0
      %v478 = vsel %vm312, %v462, 0
      %v481 = vsel %vm312, %v463, 0
      %v484 = vsel %vm312, %v464, 0
      %486 = vmatprep.subr.mxu0 0.0
      %487 = vmatpush1.msra.mxu0 0.0
      %488 = vmatprep.subr.mxu0 0.0
      %489 = vmatpush1.msra.mxu0 0.0
      %490 = vmatprep.subr.mxu0 0.0
      %491 = vmatpush1.msra.mxu0 0.0
      %492 = vmatprep.subr.mxu0 0.0
      %493 = vmatpush1.msra.mxu0 0.0
      %494 = vmatprep.subr.mxu0 0.0
      %495 = vmatpush1.msra.mxu0 0.0
      %496 = vmatprep.subr.mxu0 0.0
      %497 = vmatpush1.msra.mxu0 0.0
      %498 = vmatprep.subr.mxu0 0.0
      %499 = vmatpush1.msra.mxu0 0.0
      %500 = vmatprep.subr.mxu0 0.0
      %501 = vmatpush1.msra.mxu0 0.0
      %502 = vmatprep.subr.mxu0 0.0
      %503 = vmatpush1.msra.mxu0 0.0
      %504 = vmatprep.subr.mxu0 0.0
      %505 = vmatpush1.msra.mxu0 0.0
      %506 = vmatprep.subr.mxu0 0.0
      %507 = vmatpush1.msra.mxu0 0.0
      %508 = vmatprep.subr.mxu0 0.0
      %509 = vmatpush1.msra.mxu0 0.0
      %510 = vmatprep.subr.mxu0 0.0
      %511 = vmatpush1.msra.mxu0 0.0
      %512 = vmatprep.subr.mxu0 0.0
      %513 = vmatpush1.msra.mxu0 0.0
      %514 = vmatprep.subr.mxu0 0.0
      %515 = vmatpush1.msra.mxu0 %v466
      %516 = vmatprep.subr.mxu0 0.0
      %517 = vmatpush1.msra.mxu0 %v465
      %518 = vmatprep.subr.mxu0 0.0
      %519 = vmatpush2.msra.mxu0 0.0
      %520 = vmatprep.subr.mxu0 0.0
      %521 = vmatpush2.msra.mxu0 0.0
      %522 = vmatprep.subr.mxu0 0.0
      %523 = vmatpush2.msra.mxu0 0.0
      %524 = vmatprep.subr.mxu0 0.0
      %525 = vmatpush2.msra.mxu0 0.0
      %526 = vmatprep.subr.mxu0 0.0
      %527 = vmatpush2.msra.mxu0 0.0
      %528 = vmatprep.subr.mxu0 0.0
      %529 = vmatpush2.msra.mxu0 0.0
      %530 = vmatprep.subr.mxu0 0.0
      %531 = vmatpush2.msra.mxu0 0.0
      %532 = vmatprep.subr.mxu0 0.0
      %533 = vmatpush2.msra.mxu0 0.0
      %534 = vmatprep.subr.mxu0 0.0
      %535 = vmatpush2.msra.mxu0 0.0
      %536 = vmatprep.subr.mxu0 0.0
      %537 = vmatpush2.msra.mxu0 0.0
      %538 = vmatprep.subr.mxu0 0.0
      %539 = vmatpush2.msra.mxu0 0.0
      %540 = vmatprep.subr.mxu0 0.0
      %541 = vmatpush2.msra.mxu0 0.0
      %542 = vmatprep.subr.mxu0 0.0
      %543 = vmatpush2.msra.mxu0 0.0
      %544 = vmatprep.subr.mxu0 0.0
      %545 = vmatpush2.msra.mxu0 0.0
      %546 = vmatprep.subr.mxu0 0.0
      %547 = vmatpush2.msra.mxu0 0.0
      %548 = vmatprep.subr.mxu0 0.0
      %549 = vmatpush2.msra.mxu0 0.0
      %550 = vmatprep.mubr.f32.mxu0 0.0
      %551 = vmatmul.mubr.f32.gmra.mxu0 %v475
      %v552 = vpop.f32.mrf.mxu0
      %v553 = vadd.f32 %v472, %v552
      %v554 = vpop.f32.mrf.mxu0
      %555 = vmatprep.mubr.f32.mxu0 0.0
      %556 = vmatmul.mubr.f32.gmra.mxu0 %v478
      %v557 = vpop.f32.mrf.mxu0
      %v558 = vadd.f32 %v472, %v557
      %v559 = vpop.f32.mrf.mxu0
      %560 = vmatprep.mubr.f32.mxu0 0.0
      %561 = vmatmul.mubr.f32.gmra.mxu0 %v481
      %v562 = vpop.f32.mrf.mxu0
      %v563 = vadd.f32 %v472, %v562
      %v564 = vpop.f32.mrf.mxu0
      %565 = vmatprep.mubr.f32.mxu0 0.0
      %566 = vmatmul.mubr.f32.gmra.mxu0 %v484
      %v567 = vpop.f32.mrf.mxu0
      %v568 = vadd.f32 %v472, %v567
      %v569 = vpop.f32.mrf.mxu0
      %570 = vdwg.mxu0
      %v571 = vtanh.pop %v553
      %v572 = vtanh.pop %v558
      %v573 = vtanh.pop %v563
      %v574 = vtanh.pop %v568
      %vm575 = vcmask 64512
      %576 = vst.msk [vmem:[%s280] sm:$0xff] %vm575, %v571
      %577 = vst.msk [vmem:[%s280 + $0x8] sm:$0xff] %vm575, %v572
      %578 = vst.msk [vmem:[%s280 + $0x10] sm:$0xff] %vm575, %v573
      %579 = vst.msk [vmem:[%s280 + $0x18] sm:$0xff] %vm575, %v574
      %580 = vrot.lane.b32.xlu0 %v461, 8
      %v581 = vpop.permute.xlu0 %580
      %582 = vrot.lane.b32.xlu0 %v462, 8
      %v583 = vpop.permute.xlu0 %582
      %584 = vrot.lane.b32.xlu0 %v463, 8
      %v585 = vpop.permute.xlu0 %584
      %586 = vrot.lane.b32.xlu0 %v464, 8
      %v587 = vpop.permute.xlu0 %586
      %vm592 = vcmask 195648
      %593 = vst.msk [vmem:[%s280] sm:$0xff] %vm592, %v581
      %594 = vst.msk [vmem:[%s280 + $0x8] sm:$0xff] %vm592, %v583
      %595 = vst.msk [vmem:[%s280 + $0x10] sm:$0xff] %vm592, %v585
      %596 = vst.msk [vmem:[%s280 + $0x18] sm:$0xff] %vm592, %v587
      %s597 = smul.u32 4, %s18
      %p598 = scmp.lt.s32.totalorder %s597, 7
      %s599 = scalar_select %p598, %s597, 7
      %s600 = smul.addr %s599, 8
      %s601 = scalar_lea.vmem %s7, %s600
      // Predicated region
      $region49: #{tpu_custom_call.1} parent=47 // pred_check
        %p602 = pneg %p188
      $region50: #{tpu_custom_call.1} parent=47 // pred_check_branch
        %604 = sbr.rel (%p602) target = $region52
      $region51: #{tpu_custom_call.1} parent=47 // pred_region
        %s605 = smul.u32 4, %s18
      $region52: #{tpu_custom_call.1} parent=47 // pred_fallthru
        _
    $region48: #{tpu_custom_call.1} parent=5 // pred_fallthru
      _
    %p606 = scmp.le.s32.totalorder 2, %s13
    // Predicated region
    $region53: #{tpu_custom_call.1} parent=5 // pred_check
      %p607 = pneg %p606
    $region54: #{tpu_custom_call.1} parent=5 // pred_check_branch
      %609 = sbr.rel (%p607) target = $region56
    $region55: #{tpu_custom_call.1} parent=5 // pred_region
      %s610 = ssub.s32 %s13, 2
      // Predicated region
      $region57: #{tpu_custom_call.1} parent=55 // pred_check
        %p611 = pneg %p194
      $region58: #{tpu_custom_call.1} parent=55 // pred_check_branch
        %613 = sbr.rel (%p611) target = $region60
      $region59: #{tpu_custom_call.1} parent=55 // pred_region
        %s614 = smul.u32 4, %s19
        %p615 = scmp.lt.s32.totalorder %s614, 7
        %s616 = scalar_select %p615, %s614, 7
        %s617 = smul.addr %s616, 8
        %s618 = scalar_lea.vmem %s7, %s617
      $region60: #{tpu_custom_call.1} parent=55 // pred_fallthru
        _
    $region56: #{tpu_custom_call.1} parent=5 // pred_fallthru
      _
  $region6: #{tpu_custom_call.1} parent=0 // loop_footer
    %s17 = sadd.s32 1, %s13
  $region7: #{tpu_custom_call.1} parent=0 // loop_footer_branch
    %12 = sbr.rel target = $region3
  $region8: #{tpu_custom_call.1} parent=0 // loop_exit
    _

</llo_original>
